<compile_context>
chip_gen: v5e
topology: v5e:2x2
jax: 0.10.0
libtpu: 0.0.40
codegen_flags: <defaults>
</compile_context>

<pallas_src>
import jax
import jax.numpy as jnp
from jax.experimental import pallas as pl
from jax.experimental.pallas import tpu as pltpu

LANE = 128  # TPU lane width; batch tiles are multiples of this.


def _round_up(n, m):
    return ((n + m - 1) // m) * m


def actor_net_kernel(tx_ref, w1_ref, b1_ref, w2_ref, b2_ref,
                     w3_ref, b3_ref, out_ref):
    # Feature-major layout (batch on lanes):
    #   tx    : (3, TB)   rows = [t, x0, x1]
    #   w1    : (H, 3)    b1 : (H, 1)
    #   w2    : (H, H)    b2 : (H, 1)     (w2 may be bf16)
    #   w3    : (H, 2)    b3 : (2, 1)
    #   out   : (2, TB)
    t_row = tx_ref[0:1, :]
    x0 = tx_ref[1:2, :]
    x1 = tx_ref[2:3, :]

    # ---- Layer 1: K=3 -> VPU broadcast FMAs (no MXU) -----------------------
    w1 = w1_ref[...]                                  # (H, 3)
    h1 = (w1[:, 0:1] * t_row
          + w1[:, 1:2] * x0
          + w1[:, 2:3] * x1
          + b1_ref[...])                              # (H, TB) f32
    h1 = jnp.maximum(h1, 0.0)

    # ---- Layer 2: HxH -> MXU (operands in w2's dtype, f32 accumulate) ------
    h2 = jnp.dot(w2_ref[...], h1.astype(w2_ref.dtype),
                 preferred_element_type=jnp.float32)  # (H, TB)
    h2 = jnp.maximum(h2 + b2_ref[...], 0.0)

    # ---- Layer 3: N=2 -> VPU multiply + XLU sublane reduce, direct stores --
    w3 = w3_ref[...]                                  # (H, 2)
    out_ref[0:1, :] = (jnp.sum(w3[:, 0:1] * h2, axis=0, keepdims=True)
                       + b3_ref[0:1, :])
    out_ref[1:2, :] = (jnp.sum(w3[:, 1:2] * h2, axis=0, keepdims=True)
                       + b3_ref[1:2, :])


def actor_net_forward_fm(tx, params, *, tile_b=8192,
                         matmul_dtype=jnp.bfloat16):
    """Feature-major forward.  tx: (3, B) rows [t, x0, x1]  ->  (2, B)."""
    _, B = tx.shape
    H = params["w1"].shape[0]

    # --- choose lane-aligned batch tile -------------------------------------
    # Per-batch-element VMEM cost (dbl-buffered I/O + h1/h1bf16/h2 temps).
    per_elem = 2 * (3 + 2) * 4 + 4 * H * 4
    tb_cap = max(LANE, ((40 * 2 ** 20) // per_elem) // LANE * LANE)
    tile_b = min(tile_b, tb_cap)

    b_lane = _round_up(B, LANE)
    if b_lane <= 2 * LANE:
        tb = b_lane                                   # tiny batch: one tile
    else:
        # aim for >= 2 grid steps so "parallel" can use both v7x TensorCores
        tb = min(tile_b, _round_up((b_lane + 1) // 2, LANE))
    b_pad = _round_up(b_lane, tb)

    tx = tx.astype(jnp.float32)
    if b_pad != B:
        tx = jnp.pad(tx, ((0, 0), (0, b_pad - B)))

    grid = (b_pad // tb,)

    def batched(rows):
        return pl.BlockSpec((rows, tb), lambda i: (0, i))

    def resident(shape):  # constant block index -> stays VMEM-resident
        return pl.BlockSpec(shape, lambda i: (0, 0))

    w2 = params["w2"].astype(matmul_dtype)

    # Scoped-VMEM budget derived from the tile (safe on v5e/v6e/v7x).
    w2_bytes = jnp.dtype(matmul_dtype).itemsize
    weights_bytes = H * 3 * 4 + H * 4 + H * H * w2_bytes + H * 4 + H * 2 * 4 + 8
    per_step = 2 * (3 + 2) * tb * 4 + 2 * weights_bytes + 4 * H * tb * 4
    vmem_limit = int(min(max(2 * per_step, 16 * 2 ** 20), 48 * 2 ** 20))

    out_t = pl.pallas_call(
        actor_net_kernel,
        out_shape=jax.ShapeDtypeStruct((2, b_pad), jnp.float32),
        grid=grid,
        in_specs=[
            batched(3),                              # tx       (3, B_pad)
            resident((H, 3)), resident((H, 1)),      # layer 1
            resident((H, H)), resident((H, 1)),      # layer 2
            resident((H, 2)), resident((2, 1)),      # layer 3
        ],
        out_specs=batched(2),
        compiler_params=pltpu.CompilerParams(
            dimension_semantics=("parallel",),       # megacore-shard the batch
            vmem_limit_bytes=vmem_limit),
    )(tx,
      params["w1"], params["b1"],
      w2, params["b2"],
      params["w3"], params["b3"])

    return out_t[:, :B]                              # (2, B) feature-major


def actor_net_forward(t, x, params, *, tile_b=8192,
                      matmul_dtype=jnp.bfloat16):
    """PyTorch-signature convenience wrapper.
    t: (B,) or (B,1); x: (B,2)  ->  (B,2) mean action.
    Production callers should prefer actor_net_forward_fm to avoid the
    batch-major <-> feature-major transposes here (pure layout plumbing)."""
    t_row = jnp.reshape(t.astype(jnp.float32), (1, -1))   # (1, B)
    tx = jnp.concatenate([t_row, x.astype(jnp.float32).T], axis=0)  # (3, B)
    out_fm = actor_net_forward_fm(tx, params, tile_b=tile_b,
                                  matmul_dtype=matmul_dtype)
    return out_fm.T                                        # (B, 2)


def init_params(key, hidden_dim=64):
    """PyTorch-default init; weights stored feature-major for the kernel:
       w1: (H,3)=fc1.weight, w2: (H,H)=fc2.weight, w3: (H,2)=out.weight.T,
       biases as column vectors."""
    k1, k2, k3, k4, k5, k6 = jax.random.split(key, 6)

    def linear(kw, kb, fan_in, fan_out):
        bound = 1.0 / jnp.sqrt(float(fan_in))
        w = jax.random.uniform(kw, (fan_out, fan_in), jnp.float32, -bound, bound)
        b = jax.random.uniform(kb, (fan_out, 1), jnp.float32, -bound, bound)
        return w, b

    w1, b1 = linear(k1, k2, 3, hidden_dim)           # (H,3), (H,1)
    w2, b2 = linear(k3, k4, hidden_dim, hidden_dim)  # (H,H), (H,1)
    w3_pt, b3 = linear(k5, k6, hidden_dim, 2)        # (2,H), (2,1)
    return {"w1": w1, "b1": b1, "w2": w2, "b2": b2,
            "w3": w3_pt.T, "b3": b3}                 # w3 stored (H,2)


def _reference(t, x, params):
    """Pure-JAX batch-major reference (same math as the PyTorch module)."""
    if t.ndim == 1:
        t = t[:, None]
    inp = jnp.concatenate([t, x], axis=1)                            # (B,3)
    h = jnp.maximum(inp @ params["w1"].T + params["b1"].T, 0.0)
    h = jnp.maximum(h @ params["w2"].T + params["b2"].T, 0.0)
    return h @ params["w3"] + params["b3"].T                          # (B,2)


if __name__ == "__main__":
    key = jax.random.PRNGKey(0)
    kp, kt, kx, kt2, kx2 = jax.random.split(key, 5)

    hidden_dim = 64
    params = init_params(kp, hidden_dim)

    # --- Check 1: small batch, exact f32 path (tight tolerance) -------------
    batch = 8
    t = jax.random.uniform(kt, (batch,), jnp.float32)        # (B,)
    x = jax.random.normal(kx, (batch, 2), jnp.float32)       # (B, 2)
    ref = _reference(t, x, params)

    out_f32 = jax.block_until_ready(
        actor_net_forward(t, x, params, matmul_dtype=jnp.float32))
    assert out_f32.shape == (batch, 2)
    assert jnp.allclose(out_f32, ref, atol=1e-4, rtol=1e-5), \
        "mismatch vs reference (B=8, f32 matmul)"

    # Default (bf16-operand matmul, f32 accumulate) -> relaxed tolerance.
    out_bf16 = jax.block_until_ready(actor_net_forward(t, x, params))
    assert jnp.allclose(out_bf16, ref, atol=1e-2, rtol=1e-2), \
        "mismatch vs reference (B=8, bf16 matmul)"

    # --- Check 2: non-multiple-of-128 batch, multi-step parallel grid -------
    batch2 = 300
    t2 = jax.random.uniform(kt2, (batch2, 1), jnp.float32)   # (B,1) branch
    x2 = jax.random.normal(kx2, (batch2, 2), jnp.float32)
    ref2 = _reference(t2, x2, params)

    out2 = jax.block_until_ready(
        actor_net_forward(t2, x2, params, tile_b=128))
    assert out2.shape == (batch2, 2)
    assert jnp.allclose(out2, ref2, atol=1e-2, rtol=1e-2), \
        "mismatch vs reference (B=300)"

    # --- Check 3: feature-major fast path (no wrapper transposes) -----------
    tx2 = jnp.concatenate([t2.T, x2.T], axis=0)               # (3, B)
    out_fm = jax.block_until_ready(actor_net_forward_fm(tx2, params))
    assert out_fm.shape == (2, batch2)
    assert jnp.allclose(out_fm.T, ref2, atol=1e-2, rtol=1e-2), \
        "mismatch vs reference (feature-major path)"

    print("KERNEL_OK")
</pallas_src>

<mosaic_0001>
module attributes {stable_mosaic.version = 11 : i64} {
  func.func @actor_net_kernel(%arg0: i32, %arg1: memref<3x128xf32, #tpu.memory_space<vmem>>, %arg2: memref<64x3xf32, #tpu.memory_space<vmem>>, %arg3: memref<64x1xf32, #tpu.memory_space<vmem>>, %arg4: memref<64x64xf32, #tpu.memory_space<vmem>>, %arg5: memref<64x1xf32, #tpu.memory_space<vmem>>, %arg6: memref<64x2xf32, #tpu.memory_space<vmem>>, %arg7: memref<2x1xf32, #tpu.memory_space<vmem>>, %arg8: memref<2x128xf32, #tpu.memory_space<vmem>>) attributes {dimension_semantics = [#tpu.dimension_semantics<parallel>], iteration_bounds = array<i64: 1>, scalar_prefetch = 0 : i64, scratch_operands = 0 : i64, tpu.core_type = #tpu.core_type<tc>, window_params = [{transform_indices = @transform_0, window_bounds = array<i64: 3, 128>}, {pipeline_mode = #tpu.pipeline_mode<synchronous>, transform_indices = @transform_1, window_bounds = array<i64: 64, 3>}, {pipeline_mode = #tpu.pipeline_mode<synchronous>, transform_indices = @transform_2, window_bounds = array<i64: 64, 1>}, {pipeline_mode = #tpu.pipeline_mode<synchronous>, transform_indices = @transform_3, window_bounds = array<i64: 64, 64>}, {pipeline_mode = #tpu.pipeline_mode<synchronous>, transform_indices = @transform_4, window_bounds = array<i64: 64, 1>}, {pipeline_mode = #tpu.pipeline_mode<synchronous>, transform_indices = @transform_5, window_bounds = array<i64: 64, 2>}, {pipeline_mode = #tpu.pipeline_mode<synchronous>, transform_indices = @transform_6, window_bounds = array<i64: 2, 1>}, {transform_indices = @transform_7, window_bounds = array<i64: 2, 128>}]} {
    %c0 = arith.constant 0 : index
    %c0_0 = arith.constant 0 : index
    %0 = vector.load %arg1[%c0, %c0_0] : memref<3x128xf32, #tpu.memory_space<vmem>>, vector<1x128xf32>
    %c1 = arith.constant 1 : index
    %c0_1 = arith.constant 0 : index
    %1 = vector.load %arg1[%c1, %c0_1] : memref<3x128xf32, #tpu.memory_space<vmem>>, vector<1x128xf32>
    %c2 = arith.constant 2 : index
    %c0_2 = arith.constant 0 : index
    %2 = vector.load %arg1[%c2, %c0_2] : memref<3x128xf32, #tpu.memory_space<vmem>>, vector<1x128xf32>
    %c0_3 = arith.constant 0 : index
    %c0_4 = arith.constant 0 : index
    %3 = vector.load %arg2[%c0_3, %c0_4] : memref<64x3xf32, #tpu.memory_space<vmem>>, vector<64x3xf32>
    %4 = vector.extract_strided_slice %3 {offsets = [0, 0], sizes = [64, 1], strides = [1, 1]} : vector<64x3xf32> to vector<64x1xf32>
    %5 = vector.broadcast %4 : vector<64x1xf32> to vector<64x128xf32>
    %6 = vector.broadcast %0 : vector<1x128xf32> to vector<64x128xf32>
    %7 = arith.mulf %5, %6 : vector<64x128xf32>
    %8 = vector.extract_strided_slice %3 {offsets = [0, 1], sizes = [64, 1], strides = [1, 1]} : vector<64x3xf32> to vector<64x1xf32>
    %9 = vector.broadcast %8 : vector<64x1xf32> to vector<64x128xf32>
    %10 = vector.broadcast %1 : vector<1x128xf32> to vector<64x128xf32>
    %11 = arith.mulf %9, %10 : vector<64x128xf32>
    %12 = arith.addf %7, %11 : vector<64x128xf32>
    %13 = vector.extract_strided_slice %3 {offsets = [0, 2], sizes = [64, 1], strides = [1, 1]} : vector<64x3xf32> to vector<64x1xf32>
    %14 = vector.broadcast %13 : vector<64x1xf32> to vector<64x128xf32>
    %15 = vector.broadcast %2 : vector<1x128xf32> to vector<64x128xf32>
    %16 = arith.mulf %14, %15 : vector<64x128xf32>
    %17 = arith.addf %12, %16 : vector<64x128xf32>
    %c0_5 = arith.constant 0 : index
    %c0_6 = arith.constant 0 : index
    %18 = vector.load %arg3[%c0_5, %c0_6] : memref<64x1xf32, #tpu.memory_space<vmem>>, vector<64x1xf32>
    %19 = vector.broadcast %18 : vector<64x1xf32> to vector<64x128xf32>
    %20 = arith.addf %17, %19 : vector<64x128xf32>
    %cst = arith.constant 0.000000e+00 : f32
    %21 = vector.broadcast %cst : f32 to vector<64x128xf32>
    %22 = arith.maximumf %20, %21 : vector<64x128xf32>
    %c0_7 = arith.constant 0 : index
    %c0_8 = arith.constant 0 : index
    %23 = vector.load %arg4[%c0_7, %c0_8] : memref<64x64xf32, #tpu.memory_space<vmem>>, vector<64x64xf32>
    %cst_9 = arith.constant dense<0.000000e+00> : vector<64x128xf32>
    %24 = tpu.matmul %23, %22, %cst_9 {dimension_numbers = #tpu.dot_dimension_numbers<[1], [0], [0], [1], [0, 0, 1, 1], [], []>} : vector<64x64xf32>, vector<64x128xf32>, vector<64x128xf32> -> vector<64x128xf32>
    %c0_10 = arith.constant 0 : index
    %c0_11 = arith.constant 0 : index
    %25 = vector.load %arg5[%c0_10, %c0_11] : memref<64x1xf32, #tpu.memory_space<vmem>>, vector<64x1xf32>
    %26 = vector.broadcast %25 : vector<64x1xf32> to vector<64x128xf32>
    %27 = arith.addf %24, %26 : vector<64x128xf32>
    %cst_12 = arith.constant 0.000000e+00 : f32
    %28 = vector.broadcast %cst_12 : f32 to vector<64x128xf32>
    %29 = arith.maximumf %27, %28 : vector<64x128xf32>
    %c0_13 = arith.constant 0 : index
    %c0_14 = arith.constant 0 : index
    %30 = vector.load %arg6[%c0_13, %c0_14] : memref<64x2xf32, #tpu.memory_space<vmem>>, vector<64x2xf32>
    %31 = vector.extract_strided_slice %30 {offsets = [0, 0], sizes = [64, 1], strides = [1, 1]} : vector<64x2xf32> to vector<64x1xf32>
    %32 = vector.broadcast %31 : vector<64x1xf32> to vector<64x128xf32>
    %33 = arith.mulf %32, %29 : vector<64x128xf32>
    %cst_15 = arith.constant dense<0.000000e+00> : vector<128xf32>
    %34 = vector.multi_reduction <add>, %33, %cst_15 [0] : vector<64x128xf32> to vector<128xf32>
    %35 = vector.shape_cast %34 : vector<128xf32> to vector<1x128xf32>
    %c0_16 = arith.constant 0 : index
    %c0_17 = arith.constant 0 : index
    %36 = vector.load %arg7[%c0_16, %c0_17] : memref<2x1xf32, #tpu.memory_space<vmem>>, vector<1x1xf32>
    %37 = vector.broadcast %36 : vector<1x1xf32> to vector<1x128xf32>
    %38 = arith.addf %35, %37 : vector<1x128xf32>
    %c0_18 = arith.constant 0 : index
    %c0_19 = arith.constant 0 : index
    %39 = vector.load %arg8[%c0_18, %c0_19] : memref<2x128xf32, #tpu.memory_space<vmem>>, vector<1x128xf32>
    tpu.vector_store %arg8[%c0_18, %c0_19], %38 {strides = array<i32>} : memref<2x128xf32, #tpu.memory_space<vmem>>, vector<1x128xf32>,
    %40 = vector.extract_strided_slice %30 {offsets = [0, 1], sizes = [64, 1], strides = [1, 1]} : vector<64x2xf32> to vector<64x1xf32>
    %41 = vector.broadcast %40 : vector<64x1xf32> to vector<64x128xf32>
    %42 = arith.mulf %41, %29 : vector<64x128xf32>
    %cst_20 = arith.constant dense<0.000000e+00> : vector<128xf32>
    %43 = vector.multi_reduction <add>, %42, %cst_20 [0] : vector<64x128xf32> to vector<128xf32>
    %44 = vector.shape_cast %43 : vector<128xf32> to vector<1x128xf32>
    %c1_21 = arith.constant 1 : index
    %c0_22 = arith.constant 0 : index
    %45 = vector.load %arg7[%c1_21, %c0_22] : memref<2x1xf32, #tpu.memory_space<vmem>>, vector<1x1xf32>
    %46 = vector.broadcast %45 : vector<1x1xf32> to vector<1x128xf32>
    %47 = arith.addf %44, %46 : vector<1x128xf32>
    %c1_23 = arith.constant 1 : index
    %c0_24 = arith.constant 0 : index
    %48 = vector.load %arg8[%c1_23, %c0_24] : memref<2x128xf32, #tpu.memory_space<vmem>>, vector<1x128xf32>
    tpu.vector_store %arg8[%c1_23, %c0_24], %47 {strides = array<i32>} : memref<2x128xf32, #tpu.memory_space<vmem>>, vector<1x128xf32>,
    return
  }
  func.func @transform_0(%arg0: i32) -> (i32, i32) {
    %c0_i32 = arith.constant 0 : i32
    %c0_i32_0 = arith.constant 0 : i32
    return %c0_i32, %arg0 : i32, i32
  }
  func.func @transform_1(%arg0: i32) -> (i32, i32) {
    %c0_i32 = arith.constant 0 : i32
    %c0_i32_0 = arith.constant 0 : i32
    %c0_i32_1 = arith.constant 0 : i32
    return %c0_i32, %c0_i32_0 : i32, i32
  }
  func.func @transform_2(%arg0: i32) -> (i32, i32) {
    %c0_i32 = arith.constant 0 : i32
    %c0_i32_0 = arith.constant 0 : i32
    %c0_i32_1 = arith.constant 0 : i32
    return %c0_i32, %c0_i32_0 : i32, i32
  }
  func.func @transform_3(%arg0: i32) -> (i32, i32) {
    %c0_i32 = arith.constant 0 : i32
    %c0_i32_0 = arith.constant 0 : i32
    %c0_i32_1 = arith.constant 0 : i32
    return %c0_i32, %c0_i32_0 : i32, i32
  }
  func.func @transform_4(%arg0: i32) -> (i32, i32) {
    %c0_i32 = arith.constant 0 : i32
    %c0_i32_0 = arith.constant 0 : i32
    %c0_i32_1 = arith.constant 0 : i32
    return %c0_i32, %c0_i32_0 : i32, i32
  }
  func.func @transform_5(%arg0: i32) -> (i32, i32) {
    %c0_i32 = arith.constant 0 : i32
    %c0_i32_0 = arith.constant 0 : i32
    %c0_i32_1 = arith.constant 0 : i32
    return %c0_i32, %c0_i32_0 : i32, i32
  }
  func.func @transform_6(%arg0: i32) -> (i32, i32) {
    %c0_i32 = arith.constant 0 : i32
    %c0_i32_0 = arith.constant 0 : i32
    %c0_i32_1 = arith.constant 0 : i32
    return %c0_i32, %c0_i32_0 : i32, i32
  }
  func.func @transform_7(%arg0: i32) -> (i32, i32) {
    %c0_i32 = arith.constant 0 : i32
    %c0_i32_0 = arith.constant 0 : i32
    return %c0_i32, %arg0 : i32, i32
  }
}

</mosaic_0001>

<llo_original>
// kernel: tpu_custom_call.1
$region0: #{tpu_custom_call.1}
  #allocation0 [shape = 'u32[]', space=smem, size = 0x4, offset = 0x4, fixed_abs, tag = 'smem constant byte address 0x4 - core index']
  #allocation1 [shape = 'u32[72,128]{1,0:T(1,128)}', space=vmem, size = 0x9000, scoped, tag = 'internal scratch']
  %s0 = inlined_call_operand.vmem [shape: f32[3,128], index: 0, kind: input, shape index: {}]
  %s1 = inlined_call_operand.vmem [shape: f32[64,3], index: 1, kind: input, shape index: {}]
  %s2 = inlined_call_operand.vmem [shape: f32[64,1], index: 2, kind: input, shape index: {}]
  %s3 = inlined_call_operand.vmem [shape: f32[64,64], index: 3, kind: input, shape index: {}]
  %s4 = inlined_call_operand.vmem [shape: f32[64,1], index: 4, kind: input, shape index: {}]
  %s5 = inlined_call_operand.vmem [shape: f32[64,2], index: 5, kind: input, shape index: {}]
  %s6 = inlined_call_operand.vmem [shape: f32[2,1], index: 6, kind: input, shape index: {}]
  %s7 = inlined_call_operand.hbm [shape: f32[2,128], index: 7, kind: output, shape index: {}]
  %s8 = sld [smem:[#allocation0]]
  $region38: #{tpu_custom_call.1} parent=0
    _
  %s10 = ssub.s32 1, %s8
  %s11 = scalar_select 0, %s10, %s8
  $region1: #{tpu_custom_call.1} parent=0
    #allocation2 [shape = 'u8[1024]{0}', space=vmem, size = 0x400, scoped, tag = 'output window, operand 0, single buffered']
    #allocation3 [shape = 's32[1]{0}', space=sflag, size = 0x4, scoped, tag = 'scoped memory for tpu_custom_call.1']
    %12 = vsyncpa [#allocation3], 0
    // Predicated region
    $region2: #{tpu_custom_call.1} parent=1 // pred_check
      _
    $region3: #{tpu_custom_call.1} parent=1 // pred_check_branch
      %14 = sbr.rel (0) target = $region5
    $region4: #{tpu_custom_call.1} parent=1 // pred_region
      _
    $region5: #{tpu_custom_call.1} parent=1 // pred_fallthru
      _
    // Predicated region
    $region6: #{tpu_custom_call.1} parent=1 // pred_check
      _
    $region7: #{tpu_custom_call.1} parent=1 // pred_check_branch
      %16 = sbr.rel (0) target = $region9
    $region8: #{tpu_custom_call.1} parent=1 // pred_region
      _
    $region9: #{tpu_custom_call.1} parent=1 // pred_fallthru
      _
    // Predicated region
    $region10: #{tpu_custom_call.1} parent=1 // pred_check
      _
    $region11: #{tpu_custom_call.1} parent=1 // pred_check_branch
      %18 = sbr.rel (0) target = $region13
    $region12: #{tpu_custom_call.1} parent=1 // pred_region
      _
    $region13: #{tpu_custom_call.1} parent=1 // pred_fallthru
      _
    // Predicated region
    $region14: #{tpu_custom_call.1} parent=1 // pred_check
      _
    $region15: #{tpu_custom_call.1} parent=1 // pred_check_branch
      %20 = sbr.rel (0) target = $region17
    $region16: #{tpu_custom_call.1} parent=1 // pred_region
      _
    $region17: #{tpu_custom_call.1} parent=1 // pred_fallthru
      _
    // Predicated region
    $region18: #{tpu_custom_call.1} parent=1 // pred_check
      _
    $region19: #{tpu_custom_call.1} parent=1 // pred_check_branch
      %22 = sbr.rel (0) target = $region21
    $region20: #{tpu_custom_call.1} parent=1 // pred_region
      _
    $region21: #{tpu_custom_call.1} parent=1 // pred_fallthru
      _
    // Predicated region
    $region22: #{tpu_custom_call.1} parent=1 // pred_check
      _
    $region23: #{tpu_custom_call.1} parent=1 // pred_check_branch
      %24 = sbr.rel (0) target = $region25
    $region24: #{tpu_custom_call.1} parent=1 // pred_region
      _
    $region25: #{tpu_custom_call.1} parent=1 // pred_fallthru
      _
    // Predicated region
    $region26: #{tpu_custom_call.1} parent=1 // pred_check
      _
    $region27: #{tpu_custom_call.1} parent=1 // pred_check_branch
      %26 = sbr.rel (0) target = $region29
    $region28: #{tpu_custom_call.1} parent=1 // pred_region
      _
    $region29: #{tpu_custom_call.1} parent=1 // pred_fallthru
      _
    %v27 = vld [vmem:[%s0] sm:$0x1]
    %v28 = vld [vmem:[%s0 + $0x1] sm:$0x1]
    %v29 = vld [vmem:[%s0 + $0x2] sm:$0x1]
    %v30 = vld [vmem:[%s1] sm:$0xff]
    %v31 = vld [vmem:[%s1 + $0x8] sm:$0xff]
    %v32 = vld [vmem:[%s1 + $0x10] sm:$0xff]
    %v33 = vld [vmem:[%s1 + $0x18] sm:$0xff]
    %v34 = vld [vmem:[%s1 + $0x20] sm:$0xff]
    %v35 = vld [vmem:[%s1 + $0x28] sm:$0xff]
    %v36 = vld [vmem:[%s1 + $0x30] sm:$0xff]
    %v37 = vld [vmem:[%s1 + $0x38] sm:$0xff]
    %39 = vset.pattern.permute.xlu0 0
    %40 = vperm.xlu0 %39, %v30
    %v41 = vpop.permute.xlu0 %40
    %44 = vset.pattern.permute.xlu0 0
    %45 = vperm.xlu0 %44, %v31
    %v46 = vpop.permute.xlu0 %45
    %49 = vset.pattern.permute.xlu0 0
    %50 = vperm.xlu0 %49, %v32
    %v51 = vpop.permute.xlu0 %50
    %54 = vset.pattern.permute.xlu0 0
    %55 = vperm.xlu0 %54, %v33
    %v56 = vpop.permute.xlu0 %55
    %59 = vset.pattern.permute.xlu0 0
    %60 = vperm.xlu0 %59, %v34
    %v61 = vpop.permute.xlu0 %60
    %64 = vset.pattern.permute.xlu0 0
    %65 = vperm.xlu0 %64, %v35
    %v66 = vpop.permute.xlu0 %65
    %69 = vset.pattern.permute.xlu0 0
    %70 = vperm.xlu0 %69, %v36
    %v71 = vpop.permute.xlu0 %70
    %74 = vset.pattern.permute.xlu0 0
    %75 = vperm.xlu0 %74, %v37
    %v76 = vpop.permute.xlu0 %75
    %v78 = vperm.slane %v27, 0
    %v79 = vmul.f32 %v41, %v78
    %v80 = vmul.f32 %v46, %v78
    %v81 = vmul.f32 %v51, %v78
    %v82 = vmul.f32 %v56, %v78
    %v83 = vmul.f32 %v61, %v78
    %v84 = vmul.f32 %v66, %v78
    %v85 = vmul.f32 %v71, %v78
    %v86 = vmul.f32 %v76, %v78
    %87 = vset.pattern.permute.xlu0 1
    %88 = vperm.xlu0 %87, %v30
    %v89 = vpop.permute.xlu0 %88
    %91 = vset.pattern.permute.xlu0 1
    %92 = vperm.xlu0 %91, %v31
    %v93 = vpop.permute.xlu0 %92
    %95 = vset.pattern.permute.xlu0 1
    %96 = vperm.xlu0 %95, %v32
    %v97 = vpop.permute.xlu0 %96
    %99 = vset.pattern.permute.xlu0 1
    %100 = vperm.xlu0 %99, %v33
    %v101 = vpop.permute.xlu0 %100
    %103 = vset.pattern.permute.xlu0 1
    %104 = vperm.xlu0 %103, %v34
    %v105 = vpop.permute.xlu0 %104
    %107 = vset.pattern.permute.xlu0 1
    %108 = vperm.xlu0 %107, %v35
    %v109 = vpop.permute.xlu0 %108
    %111 = vset.pattern.permute.xlu0 1
    %112 = vperm.xlu0 %111, %v36
    %v113 = vpop.permute.xlu0 %112
    %115 = vset.pattern.permute.xlu0 1
    %116 = vperm.xlu0 %115, %v37
    %v117 = vpop.permute.xlu0 %116
    %v119 = vperm.slane %v28, 0
    %v120 = vmul.f32 %v89, %v119
    %v121 = vmul.f32 %v93, %v119
    %v122 = vmul.f32 %v97, %v119
    %v123 = vmul.f32 %v101, %v119
    %v124 = vmul.f32 %v105, %v119
    %v125 = vmul.f32 %v109, %v119
    %v126 = vmul.f32 %v113, %v119
    %v127 = vmul.f32 %v117, %v119
    %v128 = vadd.f32 %v79, %v120
    %v129 = vadd.f32 %v80, %v121
    %v130 = vadd.f32 %v81, %v122
    %v131 = vadd.f32 %v82, %v123
    %v132 = vadd.f32 %v83, %v124
    %v133 = vadd.f32 %v84, %v125
    %v134 = vadd.f32 %v85, %v126
    %v135 = vadd.f32 %v86, %v127
    %136 = vset.pattern.permute.xlu0 2
    %137 = vperm.xlu0 %136, %v30
    %v138 = vpop.permute.xlu0 %137
    %140 = vset.pattern.permute.xlu0 2
    %141 = vperm.xlu0 %140, %v31
    %v142 = vpop.permute.xlu0 %141
    %144 = vset.pattern.permute.xlu0 2
    %145 = vperm.xlu0 %144, %v32
    %v146 = vpop.permute.xlu0 %145
    %148 = vset.pattern.permute.xlu0 2
    %149 = vperm.xlu0 %148, %v33
    %v150 = vpop.permute.xlu0 %149
    %152 = vset.pattern.permute.xlu0 2
    %153 = vperm.xlu0 %152, %v34
    %v154 = vpop.permute.xlu0 %153
    %156 = vset.pattern.permute.xlu0 2
    %157 = vperm.xlu0 %156, %v35
    %v158 = vpop.permute.xlu0 %157
    %160 = vset.pattern.permute.xlu0 2
    %161 = vperm.xlu0 %160, %v36
    %v162 = vpop.permute.xlu0 %161
    %164 = vset.pattern.permute.xlu0 2
    %165 = vperm.xlu0 %164, %v37
    %v166 = vpop.permute.xlu0 %165
    %v168 = vperm.slane %v29, 0
    %v169 = vmul.f32 %v138, %v168
    %v170 = vmul.f32 %v142, %v168
    %v171 = vmul.f32 %v146, %v168
    %v172 = vmul.f32 %v150, %v168
    %v173 = vmul.f32 %v154, %v168
    %v174 = vmul.f32 %v158, %v168
    %v175 = vmul.f32 %v162, %v168
    %v176 = vmul.f32 %v166, %v168
    %v177 = vadd.f32 %v128, %v169
    %v178 = vadd.f32 %v129, %v170
    %v179 = vadd.f32 %v130, %v171
    %v180 = vadd.f32 %v131, %v172
    %v181 = vadd.f32 %v132, %v173
    %v182 = vadd.f32 %v133, %v174
    %v183 = vadd.f32 %v134, %v175
    %v184 = vadd.f32 %v135, %v176
    %v185 = vld [vmem:[%s2] sm:$0xff]
    %v186 = vld [vmem:[%s2 + $0x8] sm:$0xff]
    %v187 = vld [vmem:[%s2 + $0x10] sm:$0xff]
    %v188 = vld [vmem:[%s2 + $0x18] sm:$0xff]
    %v189 = vld [vmem:[%s2 + $0x20] sm:$0xff]
    %v190 = vld [vmem:[%s2 + $0x28] sm:$0xff]
    %v191 = vld [vmem:[%s2 + $0x30] sm:$0xff]
    %v192 = vld [vmem:[%s2 + $0x38] sm:$0xff]
    %194 = vset.pattern.permute.xlu0 0
    %195 = vperm.xlu0 %194, %v185
    %v196 = vpop.permute.xlu0 %195
    %199 = vset.pattern.permute.xlu0 0
    %200 = vperm.xlu0 %199, %v186
    %v201 = vpop.permute.xlu0 %200
    %204 = vset.pattern.permute.xlu0 0
    %205 = vperm.xlu0 %204, %v187
    %v206 = vpop.permute.xlu0 %205
    %209 = vset.pattern.permute.xlu0 0
    %210 = vperm.xlu0 %209, %v188
    %v211 = vpop.permute.xlu0 %210
    %214 = vset.pattern.permute.xlu0 0
    %215 = vperm.xlu0 %214, %v189
    %v216 = vpop.permute.xlu0 %215
    %219 = vset.pattern.permute.xlu0 0
    %220 = vperm.xlu0 %219, %v190
    %v221 = vpop.permute.xlu0 %220
    %224 = vset.pattern.permute.xlu0 0
    %225 = vperm.xlu0 %224, %v191
    %v226 = vpop.permute.xlu0 %225
    %229 = vset.pattern.permute.xlu0 0
    %230 = vperm.xlu0 %229, %v192
    %v231 = vpop.permute.xlu0 %230
    %v233 = vadd.f32 %v177, %v196
    %v234 = vadd.f32 %v178, %v201
    %v235 = vadd.f32 %v179, %v206
    %v236 = vadd.f32 %v180, %v211
    %v237 = vadd.f32 %v181, %v216
    %v238 = vadd.f32 %v182, %v221
    %v239 = vadd.f32 %v183, %v226
    %v240 = vadd.f32 %v184, %v231
    %v241 = vmax.f32 %v233, 0.0
    %v242 = vmax.f32 %v234, 0.0
    %v243 = vmax.f32 %v235, 0.0
    %v244 = vmax.f32 %v236, 0.0
    %v245 = vmax.f32 %v237, 0.0
    %v246 = vmax.f32 %v238, 0.0
    %v247 = vmax.f32 %v239, 0.0
    %v248 = vmax.f32 %v240, 0.0
    %v249 = vld [vmem:[%s3] sm:$0xff]
    %v250 = vld [vmem:[%s3 + $0x8] sm:$0xff]
    %v251 = vld [vmem:[%s3 + $0x10] sm:$0xff]
    %v252 = vld [vmem:[%s3 + $0x18] sm:$0xff]
    %v253 = vld [vmem:[%s3 + $0x20] sm:$0xff]
    %v254 = vld [vmem:[%s3 + $0x28] sm:$0xff]
    %v255 = vld [vmem:[%s3 + $0x30] sm:$0xff]
    %v256 = vld [vmem:[%s3 + $0x38] sm:$0xff]
    %v257 = vld [vmem:[%s4] sm:$0xff]
    %v258 = vld [vmem:[%s4 + $0x8] sm:$0xff]
    %v259 = vld [vmem:[%s4 + $0x10] sm:$0xff]
    %v260 = vld [vmem:[%s4 + $0x18] sm:$0xff]
    %v261 = vld [vmem:[%s4 + $0x20] sm:$0xff]
    %v262 = vld [vmem:[%s4 + $0x28] sm:$0xff]
    %v263 = vld [vmem:[%s4 + $0x30] sm:$0xff]
    %v264 = vld [vmem:[%s4 + $0x38] sm:$0xff]
    %266 = vset.pattern.permute.xlu0 0
    %267 = vperm.xlu0 %266, %v257
    %v268 = vpop.permute.xlu0 %267
    %271 = vset.pattern.permute.xlu0 0
    %272 = vperm.xlu0 %271, %v258
    %v273 = vpop.permute.xlu0 %272
    %276 = vset.pattern.permute.xlu0 0
    %277 = vperm.xlu0 %276, %v259
    %v278 = vpop.permute.xlu0 %277
    %281 = vset.pattern.permute.xlu0 0
    %282 = vperm.xlu0 %281, %v260
    %v283 = vpop.permute.xlu0 %282
    %286 = vset.pattern.permute.xlu0 0
    %287 = vperm.xlu0 %286, %v261
    %v288 = vpop.permute.xlu0 %287
    %291 = vset.pattern.permute.xlu0 0
    %292 = vperm.xlu0 %291, %v262
    %v293 = vpop.permute.xlu0 %292
    %296 = vset.pattern.permute.xlu0 0
    %297 = vperm.xlu0 %296, %v263
    %v298 = vpop.permute.xlu0 %297
    %301 = vset.pattern.permute.xlu0 0
    %302 = vperm.xlu0 %301, %v264
    %v303 = vpop.permute.xlu0 %302
    %vm305 = vcmask 523264
    %v307 = vsel %vm305, %v249, 0
    %v310 = vsel %vm305, %v250, 0
    %v313 = vsel %vm305, %v251, 0
    %v316 = vsel %vm305, %v252, 0
    %v319 = vsel %vm305, %v253, 0
    %v322 = vsel %vm305, %v254, 0
    %v325 = vsel %vm305, %v255, 0
    %v328 = vsel %vm305, %v256, 0
    %330 = vmatpush.msra.mxu0 0.0
    %331 = vmatpush.msra.mxu0 0.0
    %332 = vmatpush.msra.mxu0 0.0
    %333 = vmatpush.msra.mxu0 0.0
    %334 = vmatpush.msra.mxu0 0.0
    %335 = vmatpush.msra.mxu0 0.0
    %336 = vmatpush.msra.mxu0 0.0
    %337 = vmatpush.msra.mxu0 0.0
    %338 = vmatpush.msra.mxu0 %v248
    %339 = vmatpush.msra.mxu0 %v247
    %340 = vmatpush.msra.mxu0 %v246
    %341 = vmatpush.msra.mxu0 %v245
    %342 = vmatpush.msra.mxu0 %v244
    %343 = vmatpush.msra.mxu0 %v243
    %344 = vmatpush.msra.mxu0 %v242
    %345 = vmatpush.msra.mxu0 %v241
    %346 = vmatmul.f32.gmra.mxu0 %v307
    %v347 = vpop.f32.mrf.mxu0
    %v348 = vadd.f32 %v268, %v347
    %349 = vmatmul.f32.gmra.mxu0 %v310
    %v350 = vpop.f32.mrf.mxu0
    %v351 = vadd.f32 %v273, %v350
    %352 = vmatmul.f32.gmra.mxu0 %v313
    %v353 = vpop.f32.mrf.mxu0
    %v354 = vadd.f32 %v278, %v353
    %355 = vmatmul.f32.gmra.mxu0 %v316
    %v356 = vpop.f32.mrf.mxu0
    %v357 = vadd.f32 %v283, %v356
    %358 = vmatmul.f32.gmra.mxu0 %v319
    %v359 = vpop.f32.mrf.mxu0
    %v360 = vadd.f32 %v288, %v359
    %361 = vmatmul.f32.gmra.mxu0 %v322
    %v362 = vpop.f32.mrf.mxu0
    %v363 = vadd.f32 %v293, %v362
    %364 = vmatmul.f32.gmra.mxu0 %v325
    %v365 = vpop.f32.mrf.mxu0
    %v366 = vadd.f32 %v298, %v365
    %367 = vmatmul.f32.gmra.mxu0 %v328
    %v368 = vpop.f32.mrf.mxu0
    %v369 = vadd.f32 %v303, %v368
    %370 = vdwg.mxu0
    %v371 = vmax.f32 %v348, 0.0
    %v372 = vmax.f32 %v351, 0.0
    %v373 = vmax.f32 %v354, 0.0
    %v374 = vmax.f32 %v357, 0.0
    %v375 = vmax.f32 %v360, 0.0
    %v376 = vmax.f32 %v363, 0.0
    %v377 = vmax.f32 %v366, 0.0
    %v378 = vmax.f32 %v369, 0.0
    %v379 = vld [vmem:[%s5] sm:$0xff]
    %v380 = vld [vmem:[%s5 + $0x8] sm:$0xff]
    %v381 = vld [vmem:[%s5 + $0x10] sm:$0xff]
    %v382 = vld [vmem:[%s5 + $0x18] sm:$0xff]
    %v383 = vld [vmem:[%s5 + $0x20] sm:$0xff]
    %v384 = vld [vmem:[%s5 + $0x28] sm:$0xff]
    %v385 = vld [vmem:[%s5 + $0x30] sm:$0xff]
    %v386 = vld [vmem:[%s5 + $0x38] sm:$0xff]
    %388 = vset.pattern.permute.xlu0 0
    %389 = vperm.xlu0 %388, %v379
    %v390 = vpop.permute.xlu0 %389
    %393 = vset.pattern.permute.xlu0 0
    %394 = vperm.xlu0 %393, %v380
    %v395 = vpop.permute.xlu0 %394
    %398 = vset.pattern.permute.xlu0 0
    %399 = vperm.xlu0 %398, %v381
    %v400 = vpop.permute.xlu0 %399
    %403 = vset.pattern.permute.xlu0 0
    %404 = vperm.xlu0 %403, %v382
    %v405 = vpop.permute.xlu0 %404
    %408 = vset.pattern.permute.xlu0 0
    %409 = vperm.xlu0 %408, %v383
    %v410 = vpop.permute.xlu0 %409
    %413 = vset.pattern.permute.xlu0 0
    %414 = vperm.xlu0 %413, %v384
    %v415 = vpop.permute.xlu0 %414
    %418 = vset.pattern.permute.xlu0 0
    %419 = vperm.xlu0 %418, %v385
    %v420 = vpop.permute.xlu0 %419
    %423 = vset.pattern.permute.xlu0 0
    %424 = vperm.xlu0 %423, %v386
    %v425 = vpop.permute.xlu0 %424
    %v427 = vmul.f32 %v390, %v371
    %v428 = vmul.f32 %v395, %v372
    %v429 = vmul.f32 %v400, %v373
    %v430 = vmul.f32 %v405, %v374
    %v431 = vmul.f32 %v410, %v375
    %v432 = vmul.f32 %v415, %v376
    %v433 = vmul.f32 %v420, %v377
    %v434 = vmul.f32 %v425, %v378
    %v435 = vadd.f32 %v427, %v428
    %v436 = vadd.f32 %v435, %v429
    %v437 = vadd.f32 %v436, %v430
    %v438 = vadd.f32 %v437, %v431
    %v439 = vadd.f32 %v438, %v432
    %v440 = vadd.f32 %v439, %v433
    %v441 = vadd.f32 %v440, %v434
    %v442 = vrot.slane %v441, 4
    %v443 = vadd.f32 %v441, %v442
    %v444 = vrot.slane %v443, 2
    %v445 = vadd.f32 %v443, %v444
    %v446 = vrot.slane %v445, 1
    %v447 = vadd.f32 %v445, %v446
    %v448 = vld [vmem:[%s6] sm:$0x1]
    %450 = vset.pattern.permute.xlu0 0
    %451 = vperm.xlu0 %450, %v448
    %v452 = vpop.permute.xlu0 %451
    %v454 = vadd.f32 %v447, %v452
    %455 = vst [vmem:[#allocation2] sm:$0x1] %v454
    %456 = vset.pattern.permute.xlu0 1
    %457 = vperm.xlu0 %456, %v379
    %v458 = vpop.permute.xlu0 %457
    %460 = vset.pattern.permute.xlu0 1
    %461 = vperm.xlu0 %460, %v380
    %v462 = vpop.permute.xlu0 %461
    %464 = vset.pattern.permute.xlu0 1
    %465 = vperm.xlu0 %464, %v381
    %v466 = vpop.permute.xlu0 %465
    %468 = vset.pattern.permute.xlu0 1
    %469 = vperm.xlu0 %468, %v382
    %v470 = vpop.permute.xlu0 %469
    %472 = vset.pattern.permute.xlu0 1
    %473 = vperm.xlu0 %472, %v383
    %v474 = vpop.permute.xlu0 %473
    %476 = vset.pattern.permute.xlu0 1
    %477 = vperm.xlu0 %476, %v384
    %v478 = vpop.permute.xlu0 %477
    %480 = vset.pattern.permute.xlu0 1
    %481 = vperm.xlu0 %480, %v385
    %v482 = vpop.permute.xlu0 %481
    %484 = vset.pattern.permute.xlu0 1
    %485 = vperm.xlu0 %484, %v386
    %v486 = vpop.permute.xlu0 %485
    %v488 = vmul.f32 %v458, %v371
    %v489 = vmul.f32 %v462, %v372
    %v490 = vmul.f32 %v466, %v373
    %v491 = vmul.f32 %v470, %v374
    %v492 = vmul.f32 %v474, %v375
    %v493 = vmul.f32 %v478, %v376
    %v494 = vmul.f32 %v482, %v377
    %v495 = vmul.f32 %v486, %v378
    %v496 = vadd.f32 %v488, %v489
    %v497 = vadd.f32 %v496, %v490
    %v498 = vadd.f32 %v497, %v491
    %v499 = vadd.f32 %v498, %v492
    %v500 = vadd.f32 %v499, %v493
    %v501 = vadd.f32 %v500, %v494
    %v502 = vadd.f32 %v501, %v495
    %v503 = vrot.slane %v502, 4
    %v504 = vadd.f32 %v502, %v503
    %v505 = vrot.slane %v504, 2
    %v506 = vadd.f32 %v504, %v505
    %v507 = vrot.slane %v506, 1
    %v508 = vadd.f32 %v506, %v507
    %v509 = vld [vmem:[%s6 + $0x1] sm:$0x1]
    %511 = vset.pattern.permute.xlu0 0
    %512 = vperm.xlu0 %511, %v509
    %v513 = vpop.permute.xlu0 %512
    %v515 = vadd.f32 %v508, %v513
    %516 = vst [vmem:[#allocation2 + $0x1] sm:$0x1] %v515
    // Predicated region
    $region30: #{tpu_custom_call.1} parent=1 // pred_check
      _
    $region31: #{tpu_custom_call.1} parent=1 // pred_check_branch
      %518 = sbr.rel (0) target = $region33
    $region32: #{tpu_custom_call.1} parent=1 // pred_region
      %520 = vsyncadd [#allocation3], 0
      %s522 = sshll.u32 [#allocation2], 4
      %s523 = int_to_ptr.vmem [resolvable:$true] %s522
      %s524 = sshll.u32 %s7, 4
      %s525 = int_to_ptr.hbm [resolvable:$true] %s524
      %527 = dma.vmem_to_hbm [thread:$0]  %s523, 32, %s525, [#allocation3]
    $region33: #{tpu_custom_call.1} parent=1 // pred_fallthru
      _
    // Predicated region
    $region34: #{tpu_custom_call.1} parent=1 // pred_check
      _
    $region35: #{tpu_custom_call.1} parent=1 // pred_check_branch
      %529 = sbr.rel (0) target = $region37
    $region36: #{tpu_custom_call.1} parent=1 // pred_region
      %531 = dma.done [#allocation3], 32
    $region37: #{tpu_custom_call.1} parent=1 // pred_fallthru
      _
    %532 = vsyncpa [#allocation3], 1

</llo_original>
